<compile_context>
chip_gen: v5e
topology: v5e:2x2
jax: 0.10.0
libtpu: 0.0.40
codegen_flags: <defaults>
</compile_context>

<pallas_src>
import jax
import jax.numpy as jnp
from jax.experimental import pallas as pl
from jax.experimental.pallas import tpu as pltpu


def _round_up(x, m):
    return ((x + m - 1) // m) * m


def _vmem_capacity_bytes():
    """Per-generation VMEM capacity; conservative v7x fallback."""
    try:
        info = pltpu.get_tpu_info()
        cap = int(getattr(info, "vmem_capacity_bytes"))
        if cap > 0:
            return cap
    except Exception:
        pass
    return 64 * 1024 * 1024  # v7x (smallest current generation)


# ---------------------------------------------------------------------------
# Stage 1:  W = train_x^T @ alpha     (D, C)  — streaming reduction over N
#   grid = (D-tiles [parallel], N-tiles [arbitrary reduction])
# ---------------------------------------------------------------------------
def _train_proj_kernel(train_ref, alpha_ref, w_ref):
    @pl.when(pl.program_id(1) == 0)
    def _init():
        w_ref[...] = jnp.zeros_like(w_ref)

    # Contract over the sample axis (dim 0 of both) -> (td, C), f32 accumulate
    # in the resident output block (no bf16 truncation of intermediates).
    w_ref[...] += jax.lax.dot_general(
        train_ref[...], alpha_ref[...], (((0,), (0,)), ((), ())),
        preferred_element_type=jnp.float32)


def _train_projection(train_p, alpha_p, *, tn, td, vmem_limit):
    Np, Dp = train_p.shape
    _, C = alpha_p.shape
    isz = train_p.dtype.itemsize
    grid = (Dp // td, Np // tn)
    flops = 2 * Np * Dp * C
    # alpha is re-read once per D-tile (tiny); train is read exactly once.
    bytes_accessed = Np * Dp * isz + grid[0] * Np * C * isz + Dp * C * 4
    return pl.pallas_call(
        _train_proj_kernel,
        out_shape=jax.ShapeDtypeStruct((Dp, C), jnp.float32),
        grid_spec=pltpu.PrefetchScalarGridSpec(
            num_scalar_prefetch=0,
            grid=grid,
            in_specs=[
                pl.BlockSpec((tn, td), lambda d, k: (k, d)),  # train_x tile
                pl.BlockSpec((tn, C), lambda d, k: (k, 0)),   # alpha tile (C unpadded)
            ],
            out_specs=pl.BlockSpec((td, C), lambda d, k: (d, 0)),
        ),
        compiler_params=pltpu.CompilerParams(
            dimension_semantics=("parallel", "arbitrary"),
            vmem_limit_bytes=vmem_limit),
        cost_estimate=pl.CostEstimate(
            flops=flops, transcendentals=0, bytes_accessed=bytes_accessed),
    )(train_p, alpha_p)


# ---------------------------------------------------------------------------
# Stage 2:  out = test_x @ W          (M, Cp) — lane-dense output
#   grid = (M-tiles [parallel], D-tiles [arbitrary reduction])
# ---------------------------------------------------------------------------
def _apply_kernel(test_ref, w_ref, out_ref):
    @pl.when(pl.program_id(1) == 0)
    def _init():
        out_ref[...] = jnp.zeros_like(out_ref)

    out_ref[...] += jnp.dot(test_ref[...], w_ref[...],
                            preferred_element_type=jnp.float32)


def _apply_projection(test_p, w_p, *, tm, td, vmem_limit):
    Mp, Dp = test_p.shape
    _, Cp = w_p.shape
    isz = test_p.dtype.itemsize
    w_isz = w_p.dtype.itemsize
    grid = (Mp // tm, Dp // td)
    flops = 2 * Mp * Dp * Cp
    # W (tiny) is re-read once per M-tile; test is read exactly once.
    bytes_accessed = Mp * Dp * isz + grid[0] * Dp * Cp * w_isz + Mp * Cp * 4
    return pl.pallas_call(
        _apply_kernel,
        out_shape=jax.ShapeDtypeStruct((Mp, Cp), jnp.float32),
        grid_spec=pltpu.PrefetchScalarGridSpec(
            num_scalar_prefetch=0,
            grid=grid,
            in_specs=[
                pl.BlockSpec((tm, td), lambda i, d: (i, d)),  # test_x tile
                pl.BlockSpec((td, Cp), lambda i, d: (d, 0)),  # projection slab
            ],
            out_specs=pl.BlockSpec((tm, Cp), lambda i, d: (i, 0)),
        ),
        compiler_params=pltpu.CompilerParams(
            dimension_semantics=("parallel", "arbitrary"),
            vmem_limit_bytes=vmem_limit),
        cost_estimate=pl.CostEstimate(
            flops=flops, transcendentals=0, bytes_accessed=bytes_accessed),
    )(test_p, w_p)


def kernel_module_forward(test_x, train_x, alpha, *,
                          normalize_to_sphere=False,
                          use_bf16=False,
                          tm=None, tn=None, td=None):
    """Pallas wrapper for KernelModule.forward with a linear base kernel."""
    M, D = test_x.shape
    N, D2 = train_x.shape
    assert D == D2
    N2, C = alpha.shape
    assert N == N2

    # Reference dtype is float64; TPU has no f64 -> f32 (bf16 inputs optional).
    compute_dtype = jnp.bfloat16 if use_bf16 else jnp.float32
    test_x = test_x.astype(compute_dtype)
    train_x = train_x.astype(compute_dtype)
    alpha = alpha.astype(compute_dtype)

    # Linear base kernel: normalize-to-sphere + rescale cancel exactly, so the
    # flag does not change the math (see header docstring / TODO).
    del normalize_to_sphere

    # Per-generation VMEM budgeting (v5e/v6e 128 MiB, v7x 64 MiB).
    vmem_cap = _vmem_capacity_bytes()
    vmem_limit = min(int(vmem_cap * 0.75), 100 * 1024 * 1024)
    tile_budget = int(vmem_cap * 0.40)

    # Lane-dense output: pad the class dim to a multiple of 128 only for the
    # tiny (D, C) intermediate and the output — never for HBM-streamed alpha.
    Cp = _round_up(max(C, 1), 128)
    isz = jnp.dtype(compute_dtype).itemsize

    # ---- tile heuristic ---------------------------------------------------
    # After reassociation every operand is streamed once, so tiles only need
    # to amortize per-step overhead, stay 128-aligned when large, and fit VMEM.
    tm_h = _round_up(M, 8) if M <= 512 else 512
    tn_h = _round_up(N, 8) if N <= 512 else 512

    def _fits(a_td, a_tm, a_tn):
        s1 = 2 * (a_tn * a_td + a_tn * C) * isz + 2 * a_td * C * 4
        s2 = 2 * (a_tm * a_td + a_td * Cp) * isz + 2 * a_tm * Cp * 4
        return max(s1, s2) <= tile_budget

    td_h = D  # full feature width when it fits (no D padding / W re-reads)
    if not _fits(td_h, tm_h, tn_h):
        td_h = 2048
        while td_h > 128 and not _fits(td_h, tm_h, tn_h):
            td_h //= 2
        while not _fits(td_h, tm_h, tn_h) and max(tm_h, tn_h) > 128:
            tm_h = max(128, _round_up(tm_h // 2, 8))
            tn_h = max(128, _round_up(tn_h // 2, 8))

    tm = tm_h if tm is None else max(8, _round_up(tm, 8))
    tn = tn_h if tn is None else max(8, _round_up(tn, 8))
    td = td_h if td is None else td

    if td >= D:
        td, Dp = D, D                       # full-extent feature block
    else:
        td = _round_up(td, 128)             # lane alignment when tiling D
        if td >= D:
            td, Dp = D, D
        else:
            Dp = _round_up(D, td)

    # Pad so the grids divide evenly; zero-padded rows/cols contribute zero.
    Mp = _round_up(M, tm)
    Np = _round_up(N, tn)
    test_p = jnp.pad(test_x, ((0, Mp - M), (0, Dp - D)))
    train_p = jnp.pad(train_x, ((0, Np - N), (0, Dp - D)))
    alpha_p = jnp.pad(alpha, ((0, Np - N), (0, 0)))   # class dim NOT padded

    # Stage 1:  W = train^T @ alpha   (Dp, C)  f32
    w = _train_projection(train_p, alpha_p, tn=tn, td=td, vmem_limit=vmem_limit)

    # Pad the tiny intermediate to a lane-dense width for stage 2 (XLA pad on a
    # (Dp, C) array — negligible).  Match stage-2 operand dtypes when use_bf16.
    w_p = jnp.pad(w, ((0, 0), (0, Cp - C)))
    if use_bf16:
        w_p = w_p.astype(jnp.bfloat16)

    # Stage 2:  out = test @ W        (Mp, Cp) f32
    out = _apply_projection(test_p, w_p, tm=tm, td=td, vmem_limit=vmem_limit)

    return out[:M, :C]


# ---------------------------------------------------------------------------
# Reference + self-test
# ---------------------------------------------------------------------------
def _reference(test_x, train_x, alpha, normalize_to_sphere):
    x = test_x.astype(jnp.float32)
    y = train_x.astype(jnp.float32)
    a = alpha.astype(jnp.float32)
    if normalize_to_sphere:
        xn = jnp.linalg.norm(x, axis=1)
        yn = jnp.linalg.norm(y, axis=1)
        k = (x / xn[:, None]) @ (y / yn[:, None]).T
        k = k * (xn[:, None] * yn[None, :])
    else:
        k = x @ y.T
    return k @ a


if __name__ == "__main__":
    key = jax.random.PRNGKey(0)
    # (M test samples, N train samples, D features, C outputs, forced tiles)
    cases = [
        (8, 16, 32, 4, {}),                               # small, clean shapes
        (10, 20, 37, 3, {}),                              # ragged -> padding path
        (12, 28, 300, 5, dict(tm=8, tn=8, td=128)),       # multi-block all grid axes
    ]
    for (M, N, D, C, tiles) in cases:
        k1, k2, k3, key = jax.random.split(key, 4)
        test_x = jax.random.normal(k1, (M, D), dtype=jnp.float32)
        train_x = jax.random.normal(k2, (N, D), dtype=jnp.float32)
        alpha = jax.random.normal(k3, (N, C), dtype=jnp.float32)  # dual weights

        for norm in (False, True):
            out = kernel_module_forward(test_x, train_x, alpha,
                                        normalize_to_sphere=norm, **tiles)
            jax.block_until_ready(out)
            ref = _reference(test_x, train_x, alpha, norm)
            assert out.shape == (M, C)
            assert jnp.allclose(out, ref, atol=2e-3, rtol=2e-3), \
                f"mismatch shapes={(M, N, D, C)} normalize_to_sphere={norm}"

    # bf16 streamed-input path (wrapper-side cast, f32 accumulation): loose check.
    k1, k2, k3, key = jax.random.split(key, 4)
    test_x = jax.random.normal(k1, (16, 64), dtype=jnp.float32)
    train_x = jax.random.normal(k2, (32, 64), dtype=jnp.float32)
    alpha = jax.random.normal(k3, (32, 4), dtype=jnp.float32)
    out_bf16 = kernel_module_forward(test_x, train_x, alpha, use_bf16=True)
    jax.block_until_ready(out_bf16)
    ref = _reference(test_x, train_x, alpha, False)
    rel = jnp.linalg.norm(out_bf16 - ref) / (jnp.linalg.norm(ref) + 1e-6)
    assert rel < 5e-2, f"bf16 path relative error too large: {rel}"

    print("KERNEL_OK")
</pallas_src>

<mosaic_0001>
module attributes {stable_mosaic.version = 11 : i64} {
  func.func @_train_proj_kernel(%arg0: i32, %arg1: i32, %arg2: memref<16x32xf32, #tpu.memory_space<vmem>>, %arg3: memref<16x4xf32, #tpu.memory_space<vmem>>, %arg4: memref<32x4xf32, #tpu.memory_space<vmem>>) attributes {dimension_semantics = [#tpu.dimension_semantics<parallel>, #tpu.dimension_semantics<arbitrary>], iteration_bounds = array<i64: 1, 1>, scalar_prefetch = 0 : i64, scratch_operands = 0 : i64, tpu.core_type = #tpu.core_type<tc>, window_params = [{transform_indices = @transform_0, window_bounds = array<i64: 16, 32>}, {transform_indices = @transform_1, window_bounds = array<i64: 16, 4>}, {transform_indices = @transform_2, window_bounds = array<i64: 32, 4>}]} {
    %c0_i32 = arith.constant 0 : i32
    %0 = arith.cmpi eq, %arg1, %c0_i32 : i32
    %1 = arith.extui %0 : i1 to i32
    %c0_i32_0 = arith.constant 0 : i32
    %2 = arith.cmpi ne, %1, %c0_i32_0 : i32
    scf.if %2 {
      %cst_8 = arith.constant 0.000000e+00 : f32
      %9 = vector.broadcast %cst_8 : f32 to vector<32x4xf32>
      %c0_9 = arith.constant 0 : index
      %c0_10 = arith.constant 0 : index
      %10 = vector.load %arg4[%c0_9, %c0_10] : memref<32x4xf32, #tpu.memory_space<vmem>>, vector<32x4xf32>
      tpu.vector_store %arg4[%c0_9, %c0_10], %9 {strides = array<i32>} : memref<32x4xf32, #tpu.memory_space<vmem>>, vector<32x4xf32>,
    } else {
    }
    %c0 = arith.constant 0 : index
    %c0_1 = arith.constant 0 : index
    %3 = vector.load %arg4[%c0, %c0_1] : memref<32x4xf32, #tpu.memory_space<vmem>>, vector<32x4xf32>
    %c0_2 = arith.constant 0 : index
    %c0_3 = arith.constant 0 : index
    %4 = vector.load %arg2[%c0_2, %c0_3] : memref<16x32xf32, #tpu.memory_space<vmem>>, vector<16x32xf32>
    %c0_4 = arith.constant 0 : index
    %c0_5 = arith.constant 0 : index
    %5 = vector.load %arg3[%c0_4, %c0_5] : memref<16x4xf32, #tpu.memory_space<vmem>>, vector<16x4xf32>
    %cst = arith.constant dense<0.000000e+00> : vector<32x4xf32>
    %6 = tpu.matmul %4, %5, %cst {dimension_numbers = #tpu.dot_dimension_numbers<[0], [0], [1], [1], [0, 1, 1, 1], [], []>} : vector<16x32xf32>, vector<16x4xf32>, vector<32x4xf32> -> vector<32x4xf32>
    %7 = arith.addf %3, %6 : vector<32x4xf32>
    %c0_6 = arith.constant 0 : index
    %c0_7 = arith.constant 0 : index
    %8 = vector.load %arg4[%c0_6, %c0_7] : memref<32x4xf32, #tpu.memory_space<vmem>>, vector<32x4xf32>
    tpu.vector_store %arg4[%c0_6, %c0_7], %7 {strides = array<i32>} : memref<32x4xf32, #tpu.memory_space<vmem>>, vector<32x4xf32>,
    return
  }
  func.func @transform_0(%arg0: i32, %arg1: i32) -> (i32, i32) {
    %c0_i32 = arith.constant 0 : i32
    return %arg1, %arg0 : i32, i32
  }
  func.func @transform_1(%arg0: i32, %arg1: i32) -> (i32, i32) {
    %c0_i32 = arith.constant 0 : i32
    %c0_i32_0 = arith.constant 0 : i32
    return %arg1, %c0_i32 : i32, i32
  }
  func.func @transform_2(%arg0: i32, %arg1: i32) -> (i32, i32) {
    %c0_i32 = arith.constant 0 : i32
    %c0_i32_0 = arith.constant 0 : i32
    return %arg0, %c0_i32 : i32, i32
  }
}

</mosaic_0001>

<llo_original>
// kernel: tpu_custom_call.1
$region0: #{tpu_custom_call.1}
  #allocation0 [shape = 'u32[]', space=smem, size = 0x4, offset = 0x4, fixed_abs, tag = 'smem constant byte address 0x4 - core index']
  #allocation1 [shape = 'u32[72,128]{1,0:T(1,128)}', space=vmem, size = 0x9000, scoped, tag = 'internal scratch']
  %s0 = inlined_call_operand.vmem [shape: f32[16,32], index: 0, kind: input, shape index: {}]
  %s1 = inlined_call_operand.vmem [shape: f32[16,4], index: 1, kind: input, shape index: {}]
  %s2 = inlined_call_operand.vmem [shape: f32[32,4], index: 2, kind: output, shape index: {}]
  %s3 = sld [smem:[#allocation0]]
  $region22: #{tpu_custom_call.1} parent=0
    _
  %s5 = ssub.s32 1, %s3
  %s6 = scalar_select 0, %s5, %s3
  // Predicated region
  $region2: #{tpu_custom_call.1} parent=0 // pred_check
    _
  $region3: #{tpu_custom_call.1} parent=0 // pred_check_branch
    %8 = sbr.rel (0) target = $region5
  $region4: #{tpu_custom_call.1} parent=0 // pred_region
    _
  $region5: #{tpu_custom_call.1} parent=0 // pred_fallthru
    _
  // Predicated region
  $region6: #{tpu_custom_call.1} parent=0 // pred_check
    _
  $region7: #{tpu_custom_call.1} parent=0 // pred_check_branch
    %10 = sbr.rel (0) target = $region9
  $region8: #{tpu_custom_call.1} parent=0 // pred_region
    _
  $region9: #{tpu_custom_call.1} parent=0 // pred_fallthru
    _
  %p11 = scmp.eq.s32.totalorder 0, 0
  // Predicated region
  $region10: #{tpu_custom_call.1} parent=0 // pred_check
    %p12 = pneg %p11
  $region11: #{tpu_custom_call.1} parent=0 // pred_check_branch
    %14 = sbr.rel (%p12) target = $region13
  $region12: #{tpu_custom_call.1} parent=0 // pred_region
    %vm15 = vcmask 31744
    %16 = vst.msk [vmem:[%s2] sm:$0xff] %vm15, 0.0
    %17 = vst.msk [vmem:[%s2 + $0x8] sm:$0xff] %vm15, 0.0
    %18 = vst.msk [vmem:[%s2 + $0x10] sm:$0xff] %vm15, 0.0
    %19 = vst.msk [vmem:[%s2 + $0x18] sm:$0xff] %vm15, 0.0
  $region13: #{tpu_custom_call.1} parent=0 // pred_fallthru
    _
  %v20 = vld [vmem:[%s2] sm:$0xff]
  %v21 = vld [vmem:[%s2 + $0x8] sm:$0xff]
  %v22 = vld [vmem:[%s2 + $0x10] sm:$0xff]
  %v23 = vld [vmem:[%s2 + $0x18] sm:$0xff]
  %v24 = vld [vmem:[%s0] sm:$0xff]
  %v25 = vld [vmem:[%s0 + $0x8] sm:$0xff]
  %v26 = vld [vmem:[%s1] sm:$0xff]
  %v27 = vld [vmem:[%s1 + $0x8] sm:$0xff]
  %28 = vxpose.xlu0.b32.start [1/16] %v24, 128
  %29 = vxpose.xlu0.b32.cont [2/16] %v25, 128
  %30 = vxpose.xlu0.b32.cont [3/16] 0.0, 128
  %31 = vxpose.xlu0.b32.cont [4/16] 0.0, 128
  %32 = vxpose.xlu0.b32.cont [5/16] 0.0, 128
  %33 = vxpose.xlu0.b32.cont [6/16] 0.0, 128
  %34 = vxpose.xlu0.b32.cont [7/16] 0.0, 128
  %35 = vxpose.xlu0.b32.cont [8/16] 0.0, 128
  %36 = vxpose.xlu0.b32.cont [9/16] 0.0, 128
  %37 = vxpose.xlu0.b32.cont [10/16] 0.0, 128
  %38 = vxpose.xlu0.b32.cont [11/16] 0.0, 128
  %39 = vxpose.xlu0.b32.cont [12/16] 0.0, 128
  %40 = vxpose.xlu0.b32.cont [13/16] 0.0, 128
  %41 = vxpose.xlu0.b32.cont [14/16] 0.0, 128
  %42 = vxpose.xlu0.b32.cont [15/16] 0.0, 128
  %43 = vxpose.xlu0.b32.end [16/16] 0.0, 128
  %v44 = vpop.trf.xlu0
  %v45 = vpop.trf.xlu0
  %v46 = vpop.trf.xlu0
  %v47 = vpop.trf.xlu0
  %v48 = vpop.trf.xlu0
  %v49 = vpop.trf.xlu0
  %v50 = vpop.trf.xlu0
  %v51 = vpop.trf.xlu0
  %v52 = vpop.trf.xlu0
  %v53 = vpop.trf.xlu0
  %v54 = vpop.trf.xlu0
  %v55 = vpop.trf.xlu0
  %v56 = vpop.trf.xlu0
  %v57 = vpop.trf.xlu0
  %v58 = vpop.trf.xlu0
  %v59 = vpop.trf.xlu0
  %vm60 = vcmask 130048
  %v62 = vsel %vm60, %v44, 0
  %v65 = vsel %vm60, %v45, 0
  %v68 = vsel %vm60, %v46, 0
  %v71 = vsel %vm60, %v47, 0
  %73 = vmatpush.msra.mxu0 0.0
  %74 = vmatpush.msra.mxu0 0.0
  %75 = vmatpush.msra.mxu0 0.0
  %76 = vmatpush.msra.mxu0 0.0
  %77 = vmatpush.msra.mxu0 0.0
  %78 = vmatpush.msra.mxu0 0.0
  %79 = vmatpush.msra.mxu0 0.0
  %80 = vmatpush.msra.mxu0 0.0
  %81 = vmatpush.msra.mxu0 0.0
  %82 = vmatpush.msra.mxu0 0.0
  %83 = vmatpush.msra.mxu0 0.0
  %84 = vmatpush.msra.mxu0 0.0
  %85 = vmatpush.msra.mxu0 0.0
  %86 = vmatpush.msra.mxu0 0.0
  %87 = vmatpush.msra.mxu0 %v27
  %88 = vmatpush.msra.mxu0 %v26
  %89 = vmatmul.f32.gmra.mxu0 %v62
  %v90 = vpop.f32.mrf.mxu0
  %v91 = vadd.f32 0.0, %v90
  %92 = vmatmul.f32.gmra.mxu0 %v65
  %v93 = vpop.f32.mrf.mxu0
  %v94 = vadd.f32 0.0, %v93
  %95 = vmatmul.f32.gmra.mxu0 %v68
  %v96 = vpop.f32.mrf.mxu0
  %v97 = vadd.f32 0.0, %v96
  %98 = vmatmul.f32.gmra.mxu0 %v71
  %v99 = vpop.f32.mrf.mxu0
  %v100 = vadd.f32 0.0, %v99
  %101 = vdwg.mxu0
  %v102 = vadd.f32 %v20, %v91
  %v103 = vadd.f32 %v21, %v94
  %v104 = vadd.f32 %v22, %v97
  %v105 = vadd.f32 %v23, %v100
  %vm106 = vcmask 31744
  %107 = vst.msk [vmem:[%s2] sm:$0xff] %vm106, %v102
  %108 = vst.msk [vmem:[%s2 + $0x8] sm:$0xff] %vm106, %v103
  %109 = vst.msk [vmem:[%s2 + $0x10] sm:$0xff] %vm106, %v104
  %110 = vst.msk [vmem:[%s2 + $0x18] sm:$0xff] %vm106, %v105
  // Predicated region
  $region14: #{tpu_custom_call.1} parent=0 // pred_check
    _
  $region15: #{tpu_custom_call.1} parent=0 // pred_check_branch
    %112 = sbr.rel (0) target = $region17
  $region16: #{tpu_custom_call.1} parent=0 // pred_region
    _
  $region17: #{tpu_custom_call.1} parent=0 // pred_fallthru
    _
  // Predicated region
  $region18: #{tpu_custom_call.1} parent=0 // pred_check
    _
  $region19: #{tpu_custom_call.1} parent=0 // pred_check_branch
    %114 = sbr.rel (0) target = $region21
  $region20: #{tpu_custom_call.1} parent=0 // pred_region
    _
  $region21: #{tpu_custom_call.1} parent=0 // pred_fallthru
    _

</llo_original>
